<compile_context>
chip_gen: v6e
topology: v6e:2x2x1
jax: 0.10.0
libtpu: 0.0.40
codegen_flags: <defaults>
</compile_context>

<pallas_src>
import functools
import math

import jax
import jax.numpy as jnp
from jax.experimental import pallas as pl
from jax.experimental.pallas import tpu as pltpu

LN_EPS = 1e-5  # PyTorch nn.LayerNorm default

_LANE = 128
_SUBLANE = 8


def _cdiv(a, b):
    return -(-a // b)


def _round_up(a, b):
    return _cdiv(a, b) * b


def _tpu_vmem_bytes():
    """Physical VMEM of the current chip (per TensorCore); conservative default."""
    try:
        return int(pltpu.get_tpu_info().vmem_capacity_bytes)
    except Exception:
        return 64 << 20  # v7x per-TC size; safe lower bound for sizing


def _num_tensorcores():
    """Heuristic TensorCores-per-chip (v7x has 2); only used for tile sizing."""
    try:
        kind = jax.local_devices()[0].device_kind.lower()
    except Exception:
        return 1
    return 2 if "v7" in kind else 1


@functools.lru_cache(maxsize=1)
def _buffered_constants_supported():
    """Feature-detect pipeline_mode=pl.Buffered(1) with a tiny eager probe."""
    if not hasattr(pl, "Buffered"):
        return False
    try:
        def _probe(a_ref, c_ref, o_ref):
            o_ref[...] = a_ref[...] + c_ref[...]

        probe = pl.pallas_call(
            _probe,
            out_shape=jax.ShapeDtypeStruct((8, 128), jnp.float32),
            grid=(1,),
            in_specs=[
                pl.BlockSpec((8, 128), lambda i: (0, 0)),
                pl.BlockSpec((8, 128), lambda i: (0, 0),
                             pipeline_mode=pl.Buffered(1)),
            ],
            out_specs=pl.BlockSpec((8, 128), lambda i: (0, 0)),
        )
        jax.block_until_ready(
            probe(jnp.zeros((8, 128), jnp.float32),
                  jnp.zeros((8, 128), jnp.float32)))
        return True
    except Exception:
        return False


def _residual_single_kernel(x_ref, gamma_ref, beta_ref, w_ref, b_ref, o_ref,
                            *, d, minc_pad):
    # x_ref: (tm, D); gamma/beta: (1, D); w: (D, minc_pad); b: (1, minc_pad)
    # o_ref: (tm, minc_pad) -- lane-dense output (minc_pad % 128 == 0).

    # --- LayerNorm over channels (f32, biased variance, eps inside rsqrt) ---
    x = x_ref[...].astype(jnp.float32)
    mean = jnp.mean(x, axis=-1, keepdims=True)
    centered = x - mean
    var = jnp.mean(centered * centered, axis=-1, keepdims=True)
    xn = centered * jax.lax.rsqrt(var + LN_EPS)
    xn = xn * gamma_ref[...].astype(jnp.float32) + beta_ref[...].astype(jnp.float32)
    # (the full-width f32 `x` is not referenced past this point, so it need
    #  not stay live across the MXU dot)

    # --- inner Linear on the MXU; weight columns already zero-padded to
    #     minc_pad, so y is lane-dense and needs no in-kernel concat/slice ---
    y = jnp.dot(xn.astype(w_ref.dtype), w_ref[...],
                preferred_element_type=jnp.float32)
    y = y + b_ref[...].astype(jnp.float32)

    # --- residual: re-read x from VMEM after the dot ---
    if minc_pad <= d:
        xr = x_ref[:, :minc_pad].astype(jnp.float32)  # 128-aligned slice
    else:
        # Rare path: D not a multiple of 128 and D <= Dout; pad residual
        # operand in-kernel (extra columns are dropped by the wrapper).
        xr = x_ref[...].astype(jnp.float32)
        xr = jnp.concatenate(
            [xr, jnp.zeros((xr.shape[0], minc_pad - d), jnp.float32)], axis=-1)
    o_ref[...] = (xr + y).astype(o_ref.dtype)


def _pick_tile_rows(rows, per_row_bytes, budget_bytes, num_cores):
    cands = [2048, 1024, 512, 256, 128, 64, 32, 16, 8]
    fitting = [c for c in cands if c * per_row_bytes <= budget_bytes] or [_SUBLANE]
    best = fitting[0]
    # Prefer a (not much smaller) tile that divides `rows`: skips the
    # wrapper-side zero-pad of x, a full extra HBM pass.
    for c in fitting:
        if rows % c == 0 and c * 4 >= best:
            best = c
            break
    # Never tile past the (sublane-aligned) problem size.
    best = min(best, max(_round_up(rows, _SUBLANE), _SUBLANE))
    # Multi-TC chips (v7x): keep >= 2 grid steps per core so both cores get
    # work AND each core still overlaps DMA with compute.  Single-TC chips
    # (v5e/v6e): no forced shrink.
    if num_cores > 1:
        min_steps = 2 * num_cores
        while best > _SUBLANE and _cdiv(rows, best) < min_steps:
            best = max(_round_up(best // 2, _SUBLANE), _SUBLANE)
    return best


def residual_single(x, gamma, beta, w, b, *, tile_rows=None,
                    mxu_dtype=jnp.bfloat16):
    """ResidualSingle forward.  x: (..., D); gamma/beta: (D,); w: (D, Dout); b: (Dout,).

    Note: for repeated calls, pre-cast `w` to `mxu_dtype` once at parameter
    load (or jit this wrapper) so the cast is not an HBM pass per call.
    """
    lead = x.shape[:-1]
    D = x.shape[-1]
    Dout = w.shape[1]
    minc = min(D, Dout)
    minc_pad = _round_up(minc, _LANE)
    rows = math.prod(lead) if lead else 1

    # --- constants: cast / pad columns once (cheap vs. the streamed x) ---
    w_k = w if w.dtype == mxu_dtype else w.astype(mxu_dtype)
    keep = min(Dout, minc_pad)
    w_k = w_k[:, :keep]
    b_k = b.astype(jnp.float32)[:keep]
    if keep < minc_pad:
        w_k = jnp.pad(w_k, ((0, 0), (0, minc_pad - keep)))
        b_k = jnp.pad(b_k, ((0, minc_pad - keep),))
    b2 = b_k.reshape(1, minc_pad)
    gamma2 = gamma.reshape(1, D).astype(jnp.float32)
    beta2 = beta.reshape(1, D).astype(jnp.float32)

    buffered_ok = _buffered_constants_supported()

    x_bytes = jnp.dtype(x.dtype).itemsize
    out_bytes = x_bytes
    mxu_bytes = jnp.dtype(mxu_dtype).itemsize
    const_copies = 1 if buffered_ok else 2
    const_bytes = const_copies * (
        w_k.size * jnp.dtype(w_k.dtype).itemsize
        + (gamma2.size + beta2.size + b2.size) * 4)

    vmem_phys = _tpu_vmem_bytes()

    # Per-row working set: double-buffered x/out tiles plus in-kernel f32
    # intermediates (x copy, centered, xn, headroom), the MXU-dtype cast of
    # xn, and the f32 accumulator / residual (width minc_pad).
    per_row = (2 * D * x_bytes
               + 2 * minc_pad * out_bytes
               + 4 * D * 4
               + D * mxu_bytes
               + 2 * minc_pad * 4)

    if tile_rows is None:
        tile_budget = max(int(0.45 * vmem_phys) - const_bytes, 2 << 20)
        tile_rows = _pick_tile_rows(rows, per_row, tile_budget,
                                    _num_tensorcores())

    rows_pad = _round_up(rows, tile_rows)
    x2 = x.reshape(rows, D)
    if rows_pad != rows:
        x2 = jnp.pad(x2, ((0, rows_pad - rows), (0, 0)))

    kernel = functools.partial(_residual_single_kernel, d=D, minc_pad=minc_pad)
    grid = (rows_pad // tile_rows,)

    est_vmem = tile_rows * per_row + const_bytes + (2 << 20)
    vmem_limit = min(max(est_vmem, 32 << 20), int(0.75 * vmem_phys))
    vmem_limit = int(max(vmem_limit, est_vmem))

    def const_spec(shape):
        if buffered_ok:
            return pl.BlockSpec(shape, lambda i: (0, 0),
                                pipeline_mode=pl.Buffered(1))
        return pl.BlockSpec(shape, lambda i: (0, 0))

    out2 = pl.pallas_call(
        kernel,
        out_shape=jax.ShapeDtypeStruct((rows_pad, minc_pad), x.dtype),
        grid_spec=pltpu.PrefetchScalarGridSpec(
            num_scalar_prefetch=0,
            grid=grid,
            in_specs=[
                pl.BlockSpec((tile_rows, D), lambda i: (i, 0)),  # streamed x
                const_spec((1, D)),          # gamma
                const_spec((1, D)),          # beta
                const_spec((D, minc_pad)),   # weight (columns padded to 128)
                const_spec((1, minc_pad)),   # bias
            ],
            out_specs=pl.BlockSpec((tile_rows, minc_pad), lambda i: (i, 0)),
        ),
        compiler_params=pltpu.CompilerParams(
            dimension_semantics=("parallel",),
            vmem_limit_bytes=vmem_limit),
    )(x2, gamma2, beta2, w_k, b2)

    # Only pay for the slice when padding actually happened.
    if rows_pad != rows or minc_pad != minc:
        out2 = out2[:rows, :minc]
    return out2.reshape(*lead, minc)


def residual_single_ref(x, gamma, beta, w, b):
    """Pure-JAX (f32) reference matching the PyTorch module."""
    xf = x.astype(jnp.float32)
    mean = jnp.mean(xf, axis=-1, keepdims=True)
    var = jnp.mean((xf - mean) ** 2, axis=-1, keepdims=True)
    xn = (xf - mean) * jax.lax.rsqrt(var + LN_EPS)
    xn = xn * gamma + beta
    y = jnp.dot(xn, w, precision=jax.lax.Precision.HIGHEST) + b
    minc = min(x.shape[-1], y.shape[-1])
    return (xf[..., :minc] + y[..., :minc]).astype(x.dtype)


if __name__ == "__main__":
    # Small deterministic example: batch=2, seq=64, dim=256, inner out dim=192
    # (inner_dim < dim so the channel-truncation branch is exercised; dim a
    # multiple of 128 so the lane-aligned residual path is used).
    B, T, D, Dout = 2, 64, 256, 192
    key = jax.random.PRNGKey(0)
    kx, kg, kb, kw, kbi = jax.random.split(key, 5)

    x = jax.random.normal(kx, (B, T, D), dtype=jnp.float32)
    gamma = 1.0 + 0.1 * jax.random.normal(kg, (D,), dtype=jnp.float32)
    beta = 0.1 * jax.random.normal(kb, (D,), dtype=jnp.float32)
    w = jax.random.normal(kw, (D, Dout), dtype=jnp.float32) / jnp.sqrt(D)
    b = 0.01 * jax.random.normal(kbi, (Dout,), dtype=jnp.float32)

    ref = residual_single_ref(x, gamma, beta, w, b)
    minc = min(D, Dout)

    # Parity check with f32 MXU operands (matches the f32 PyTorch module).
    out_f32 = jax.block_until_ready(
        residual_single(x, gamma, beta, w, b, mxu_dtype=jnp.float32))
    assert out_f32.shape == (B, T, minc), out_f32.shape
    assert jnp.allclose(out_f32, ref, atol=1e-3, rtol=1e-3), float(
        jnp.max(jnp.abs(out_f32 - ref)))

    # Default (performance) path: bf16 MXU operands, f32 accumulate.
    out_bf16 = jax.block_until_ready(residual_single(x, gamma, beta, w, b))
    assert out_bf16.shape == (B, T, minc), out_bf16.shape
    assert jnp.allclose(out_bf16, ref, atol=1e-1, rtol=2e-2), float(
        jnp.max(jnp.abs(out_bf16 - ref)))

    print("KERNEL_OK")
</pallas_src>

<mosaic_0001>
module attributes {stable_mosaic.version = 11 : i64} {
  func.func @_probe(%arg0: i32, %arg1: memref<8x128xf32, #tpu.memory_space<vmem>>, %arg2: memref<8x128xf32, #tpu.memory_space<vmem>>, %arg3: memref<8x128xf32, #tpu.memory_space<vmem>>) attributes {dimension_semantics = [#tpu.dimension_semantics<arbitrary>], iteration_bounds = array<i64: 1>, scalar_prefetch = 0 : i64, scratch_operands = 0 : i64, tpu.core_type = #tpu.core_type<tc>, window_params = [{pipeline_mode = #tpu.pipeline_mode<synchronous>, transform_indices = @transform_0, window_bounds = array<i64: 8, 128>}, {pipeline_mode = #tpu.pipeline_mode<synchronous>, transform_indices = @transform_1, window_bounds = array<i64: 8, 128>}, {pipeline_mode = #tpu.pipeline_mode<synchronous>, transform_indices = @transform_2, window_bounds = array<i64: 8, 128>}]} {
    %c0 = arith.constant 0 : index
    %c0_0 = arith.constant 0 : index
    %0 = vector.load %arg1[%c0, %c0_0] : memref<8x128xf32, #tpu.memory_space<vmem>>, vector<8x128xf32>
    %c0_1 = arith.constant 0 : index
    %c0_2 = arith.constant 0 : index
    %1 = vector.load %arg2[%c0_1, %c0_2] : memref<8x128xf32, #tpu.memory_space<vmem>>, vector<8x128xf32>
    %2 = arith.addf %0, %1 : vector<8x128xf32>
    %c0_3 = arith.constant 0 : index
    %c0_4 = arith.constant 0 : index
    %3 = vector.load %arg3[%c0_3, %c0_4] : memref<8x128xf32, #tpu.memory_space<vmem>>, vector<8x128xf32>
    tpu.vector_store %arg3[%c0_3, %c0_4], %2 {strides = array<i32>} : memref<8x128xf32, #tpu.memory_space<vmem>>, vector<8x128xf32>,
    return
  }
  func.func @transform_0(%arg0: i32) -> (i32, i32) {
    %c0_i32 = arith.constant 0 : i32
    %c0_i32_0 = arith.constant 0 : i32
    %c0_i32_1 = arith.constant 0 : i32
    return %c0_i32, %c0_i32_0 : i32, i32
  }
  func.func @transform_1(%arg0: i32) -> (i32, i32) {
    %c0_i32 = arith.constant 0 : i32
    %c0_i32_0 = arith.constant 0 : i32
    %c0_i32_1 = arith.constant 0 : i32
    return %c0_i32, %c0_i32_0 : i32, i32
  }
  func.func @transform_2(%arg0: i32) -> (i32, i32) {
    %c0_i32 = arith.constant 0 : i32
    %c0_i32_0 = arith.constant 0 : i32
    %c0_i32_1 = arith.constant 0 : i32
    return %c0_i32, %c0_i32_0 : i32, i32
  }
}

module attributes {stable_mosaic.version = 11 : i64} {
  func.func @_residual_single_kernel(%arg0: i32, %arg1: memref<128x256xf32, #tpu.memory_space<vmem>>, %arg2: memref<1x256xf32, #tpu.memory_space<vmem>>, %arg3: memref<1x256xf32, #tpu.memory_space<vmem>>, %arg4: memref<256x256xf32, #tpu.memory_space<vmem>>, %arg5: memref<1x256xf32, #tpu.memory_space<vmem>>, %arg6: memref<128x256xf32, #tpu.memory_space<vmem>>) attributes {dimension_semantics = [#tpu.dimension_semantics<parallel>], iteration_bounds = array<i64: 1>, scalar_prefetch = 0 : i64, scratch_operands = 0 : i64, tpu.core_type = #tpu.core_type<tc>, window_params = [{transform_indices = @transform_0, window_bounds = array<i64: 128, 256>}, {pipeline_mode = #tpu.pipeline_mode<synchronous>, transform_indices = @transform_1, window_bounds = array<i64: 1, 256>}, {pipeline_mode = #tpu.pipeline_mode<synchronous>, transform_indices = @transform_2, window_bounds = array<i64: 1, 256>}, {pipeline_mode = #tpu.pipeline_mode<synchronous>, transform_indices = @transform_3, window_bounds = array<i64: 256, 256>}, {pipeline_mode = #tpu.pipeline_mode<synchronous>, transform_indices = @transform_4, window_bounds = array<i64: 1, 256>}, {transform_indices = @transform_5, window_bounds = array<i64: 128, 256>}]} {
    %c0 = arith.constant 0 : index
    %c0_0 = arith.constant 0 : index
    %0 = vector.load %arg1[%c0, %c0_0] : memref<128x256xf32, #tpu.memory_space<vmem>>, vector<128x256xf32>
    %cst = arith.constant dense<0.000000e+00> : vector<128xf32>
    %1 = vector.multi_reduction <add>, %0, %cst [1] : vector<128x256xf32> to vector<128xf32>
    %2 = vector.shape_cast %1 : vector<128xf32> to vector<128x1xf32>
    %cst_1 = arith.constant 2.560000e+02 : f32
    %3 = vector.broadcast %cst_1 : f32 to vector<128x1xf32>
    %4 = arith.divf %2, %3 : vector<128x1xf32>
    %5 = vector.broadcast %4 : vector<128x1xf32> to vector<128x256xf32>
    %6 = arith.subf %0, %5 : vector<128x256xf32>
    %7 = arith.mulf %6, %6 : vector<128x256xf32>
    %cst_2 = arith.constant dense<0.000000e+00> : vector<128xf32>
    %8 = vector.multi_reduction <add>, %7, %cst_2 [1] : vector<128x256xf32> to vector<128xf32>
    %9 = vector.shape_cast %8 : vector<128xf32> to vector<128x1xf32>
    %cst_3 = arith.constant 2.560000e+02 : f32
    %10 = vector.broadcast %cst_3 : f32 to vector<128x1xf32>
    %11 = arith.divf %9, %10 : vector<128x1xf32>
    %cst_4 = arith.constant 9.99999974E-6 : f32
    %12 = vector.broadcast %cst_4 : f32 to vector<128x1xf32>
    %13 = arith.addf %11, %12 : vector<128x1xf32>
    %14 = math.rsqrt %13 : vector<128x1xf32>
    %15 = vector.broadcast %14 : vector<128x1xf32> to vector<128x256xf32>
    %16 = arith.mulf %6, %15 : vector<128x256xf32>
    %c0_5 = arith.constant 0 : index
    %c0_6 = arith.constant 0 : index
    %17 = vector.load %arg2[%c0_5, %c0_6] : memref<1x256xf32, #tpu.memory_space<vmem>>, vector<1x256xf32>
    %18 = vector.broadcast %17 : vector<1x256xf32> to vector<128x256xf32>
    %19 = arith.mulf %16, %18 : vector<128x256xf32>
    %c0_7 = arith.constant 0 : index
    %c0_8 = arith.constant 0 : index
    %20 = vector.load %arg3[%c0_7, %c0_8] : memref<1x256xf32, #tpu.memory_space<vmem>>, vector<1x256xf32>
    %21 = vector.broadcast %20 : vector<1x256xf32> to vector<128x256xf32>
    %22 = arith.addf %19, %21 : vector<128x256xf32>
    %c0_9 = arith.constant 0 : index
    %c0_10 = arith.constant 0 : index
    %23 = vector.load %arg4[%c0_9, %c0_10] : memref<256x256xf32, #tpu.memory_space<vmem>>, vector<256x256xf32>
    %cst_11 = arith.constant dense<0.000000e+00> : vector<128x256xf32>
    %24 = tpu.matmul %22, %23, %cst_11 {dimension_numbers = #tpu.dot_dimension_numbers<[1], [0], [0], [1], [0, 0, 1, 1], [], []>} : vector<128x256xf32>, vector<256x256xf32>, vector<128x256xf32> -> vector<128x256xf32>
    %c0_12 = arith.constant 0 : index
    %c0_13 = arith.constant 0 : index
    %25 = vector.load %arg5[%c0_12, %c0_13] : memref<1x256xf32, #tpu.memory_space<vmem>>, vector<1x256xf32>
    %26 = vector.broadcast %25 : vector<1x256xf32> to vector<128x256xf32>
    %27 = arith.addf %24, %26 : vector<128x256xf32>
    %c0_14 = arith.constant 0 : index
    %c0_15 = arith.constant 0 : index
    %28 = vector.load %arg1[%c0_14, %c0_15] : memref<128x256xf32, #tpu.memory_space<vmem>>, vector<128x256xf32>
    %29 = arith.addf %28, %27 : vector<128x256xf32>
    %c0_16 = arith.constant 0 : index
    %c0_17 = arith.constant 0 : index
    %30 = vector.load %arg6[%c0_16, %c0_17] : memref<128x256xf32, #tpu.memory_space<vmem>>, vector<128x256xf32>
    tpu.vector_store %arg6[%c0_16, %c0_17], %29 {strides = array<i32>} : memref<128x256xf32, #tpu.memory_space<vmem>>, vector<128x256xf32>,
    return
  }
  func.func @transform_0(%arg0: i32) -> (i32, i32) {
    %c0_i32 = arith.constant 0 : i32
    %c0_i32_0 = arith.constant 0 : i32
    return %arg0, %c0_i32 : i32, i32
  }
  func.func @transform_1(%arg0: i32) -> (i32, i32) {
    %c0_i32 = arith.constant 0 : i32
    %c0_i32_0 = arith.constant 0 : i32
    %c0_i32_1 = arith.constant 0 : i32
    return %c0_i32, %c0_i32_0 : i32, i32
  }
  func.func @transform_2(%arg0: i32) -> (i32, i32) {
    %c0_i32 = arith.constant 0 : i32
    %c0_i32_0 = arith.constant 0 : i32
    %c0_i32_1 = arith.constant 0 : i32
    return %c0_i32, %c0_i32_0 : i32, i32
  }
  func.func @transform_3(%arg0: i32) -> (i32, i32) {
    %c0_i32 = arith.constant 0 : i32
    %c0_i32_0 = arith.constant 0 : i32
    %c0_i32_1 = arith.constant 0 : i32
    return %c0_i32, %c0_i32_0 : i32, i32
  }
  func.func @transform_4(%arg0: i32) -> (i32, i32) {
    %c0_i32 = arith.constant 0 : i32
    %c0_i32_0 = arith.constant 0 : i32
    %c0_i32_1 = arith.constant 0 : i32
    return %c0_i32, %c0_i32_0 : i32, i32
  }
  func.func @transform_5(%arg0: i32) -> (i32, i32) {
    %c0_i32 = arith.constant 0 : i32
    %c0_i32_0 = arith.constant 0 : i32
    return %arg0, %c0_i32 : i32, i32
  }
}

</mosaic_0001>

<llo_original>
// kernel: tpu_custom_call.1
$region0: #{tpu_custom_call.1}
  #allocation0 [shape = 'u32[]', space=smem, size = 0x4, offset = 0x4, fixed_abs, tag = 'smem constant byte address 0x4 - core index']
  #allocation1 [shape = 'u32[144,128]{1,0:T(1,128)}', space=vmem, size = 0x12000, scoped, tag = 'internal scratch']
  %s0 = inlined_call_operand.hbm [shape: f32[8,128], index: 0, kind: input, shape index: {}]
  %s1 = inlined_call_operand.hbm [shape: f32[8,128], index: 1, kind: input, shape index: {}]
  %s2 = inlined_call_operand.hbm [shape: f32[8,128], index: 2, kind: output, shape index: {}]
  %s3 = sld [smem:[#allocation0]]
  $region26: #{tpu_custom_call.1} parent=0
    _
  %s5 = ssub.s32 1, %s3
  %s6 = scalar_select 0, %s5, %s3
  $region1: #{tpu_custom_call.1} parent=0
    #allocation2 [shape = 'u8[4096]{0}', space=vmem, size = 0x1000, scoped, tag = 'input window, operand 0, single buffered']
    #allocation3 [shape = 's32[1]{0}', space=sflag, size = 0x4, scoped, tag = 'scoped memory for tpu_custom_call.1']
    #allocation4 [shape = 's32[1]{0}', space=sflag, size = 0x4, scoped, tag = 'scoped memory for tpu_custom_call.1']
    #allocation5 [shape = 'u8[4096]{0}', space=vmem, size = 0x1000, scoped, tag = 'input window, operand 1, single buffered']
    #allocation6 [shape = 's32[1]{0}', space=sflag, size = 0x4, scoped, tag = 'scoped memory for tpu_custom_call.1']
    #allocation7 [shape = 'u8[4096]{0}', space=vmem, size = 0x1000, scoped, tag = 'output window, operand 0, single buffered']
    %7 = vsyncpa [#allocation3], 0
    %8 = vsyncpa [#allocation6], 0
    %9 = vsyncpa [#allocation4], 0
    // Predicated region
    $region2: #{tpu_custom_call.1} parent=1 // pred_check
      _
    $region3: #{tpu_custom_call.1} parent=1 // pred_check_branch
      %11 = sbr.rel (0) target = $region5
    $region4: #{tpu_custom_call.1} parent=1 // pred_region
      %s13 = ssub.s32 128, 128
      %14 = vsyncadd [#allocation3], %s13
      %s16 = sshll.u32 [#allocation2], 4
      %s17 = int_to_ptr.vmem [resolvable:$true] %s16
      %19 = dma.hbm_to_vmem [thread:$0]  %s0, 128, %s17, [#allocation3]
    $region5: #{tpu_custom_call.1} parent=1 // pred_fallthru
      _
    // Predicated region
    $region6: #{tpu_custom_call.1} parent=1 // pred_check
      _
    $region7: #{tpu_custom_call.1} parent=1 // pred_check_branch
      %21 = sbr.rel (0) target = $region9
    $region8: #{tpu_custom_call.1} parent=1 // pred_region
      %s23 = ssub.s32 128, 128
      %24 = vsyncadd [#allocation6], %s23
      %s26 = sshll.u32 [#allocation5], 4
      %s27 = int_to_ptr.vmem [resolvable:$true] %s26
      %29 = dma.hbm_to_vmem [thread:$0]  %s1, 128, %s27, [#allocation6]
    $region9: #{tpu_custom_call.1} parent=1 // pred_fallthru
      _
    // Predicated region
    $region10: #{tpu_custom_call.1} parent=1 // pred_check
      _
    $region11: #{tpu_custom_call.1} parent=1 // pred_check_branch
      %31 = sbr.rel (0) target = $region13
    $region12: #{tpu_custom_call.1} parent=1 // pred_region
      %32 = dma.done [#allocation3], 128
    $region13: #{tpu_custom_call.1} parent=1 // pred_fallthru
      _
    // Predicated region
    $region14: #{tpu_custom_call.1} parent=1 // pred_check
      _
    $region15: #{tpu_custom_call.1} parent=1 // pred_check_branch
      %34 = sbr.rel (0) target = $region17
    $region16: #{tpu_custom_call.1} parent=1 // pred_region
      %35 = dma.done [#allocation6], 128
    $region17: #{tpu_custom_call.1} parent=1 // pred_fallthru
      _
    %v36 = vld [vmem:[#allocation2] sm:$0xff]
    %v37 = vld [vmem:[#allocation5] sm:$0xff]
    %v38 = vadd.f32 %v36, %v37
    %39 = vst [vmem:[#allocation7] sm:$0xff] %v38
    // Predicated region
    $region18: #{tpu_custom_call.1} parent=1 // pred_check
      _
    $region19: #{tpu_custom_call.1} parent=1 // pred_check_branch
      %41 = sbr.rel (0) target = $region21
    $region20: #{tpu_custom_call.1} parent=1 // pred_region
      %s43 = ssub.s32 128, 128
      %44 = vsyncadd [#allocation4], %s43
      %s46 = sshll.u32 [#allocation7], 4
      %s47 = int_to_ptr.vmem [resolvable:$true] %s46
      %49 = dma.vmem_to_hbm [thread:$0]  %s47, 128, %s2, [#allocation4]
    $region21: #{tpu_custom_call.1} parent=1 // pred_fallthru
      _
    // Predicated region
    $region22: #{tpu_custom_call.1} parent=1 // pred_check
      _
    $region23: #{tpu_custom_call.1} parent=1 // pred_check_branch
      %51 = sbr.rel (0) target = $region25
    $region24: #{tpu_custom_call.1} parent=1 // pred_region
      %52 = dma.done [#allocation4], 128
    $region25: #{tpu_custom_call.1} parent=1 // pred_fallthru
      _
    %53 = vsyncpa [#allocation3], 1
    %54 = vsyncpa [#allocation6], 1
    %55 = vsyncpa [#allocation4], 1

// kernel: tpu_custom_call.1
$region0: #{tpu_custom_call.1}
  #allocation0 [shape = 'u32[]', space=smem, size = 0x4, offset = 0x4, fixed_abs, tag = 'smem constant byte address 0x4 - core index']
  #allocation1 [shape = 'u32[144,128]{1,0:T(1,128)}', space=vmem, size = 0x12000, scoped, tag = 'internal scratch']
  %s0 = inlined_call_operand.hbm [shape: f32[128,256], index: 0, kind: input, shape index: {}]
  %s1 = inlined_call_operand.hbm [shape: f32[1,256], index: 1, kind: input, shape index: {}]
  %s2 = inlined_call_operand.vmem [shape: f32[1,256], index: 2, kind: input, shape index: {}]
  %s3 = inlined_call_operand.hbm [shape: f32[256,256], index: 3, kind: input, shape index: {}]
  %s4 = inlined_call_operand.vmem [shape: f32[1,256], index: 4, kind: input, shape index: {}]
  %s5 = inlined_call_operand.hbm [shape: f32[128,256], index: 5, kind: output, shape index: {}]
  %s6 = sld [smem:[#allocation0]]
  $region42: #{tpu_custom_call.1} parent=0
    _
  %s8 = ssub.s32 1, %s6
  %s9 = scalar_select 0, %s8, %s6
  $region1: #{tpu_custom_call.1} parent=0
    #allocation2 [shape = 'u8[131072]{0}', space=vmem, size = 0x20000, scoped, tag = 'input window, operand 0, single buffered']
    #allocation3 [shape = 's32[1]{0}', space=sflag, size = 0x4, scoped, tag = 'scoped memory for tpu_custom_call.1']
    #allocation4 [shape = 's32[1]{0}', space=sflag, size = 0x4, scoped, tag = 'scoped memory for tpu_custom_call.1']
    #allocation5 [shape = 'u8[1024]{0}', space=vmem, size = 0x400, scoped, tag = 'input window, operand 1, single buffered']
    #allocation6 [shape = 's32[1]{0}', space=sflag, size = 0x4, scoped, tag = 'scoped memory for tpu_custom_call.1']
    #allocation7 [shape = 'u8[262144]{0}', space=vmem, size = 0x40000, scoped, tag = 'input window, operand 3, single buffered']
    #allocation8 [shape = 'u8[131072]{0}', space=vmem, size = 0x20000, scoped, tag = 'output window, operand 0, single buffered']
    %10 = vsyncpa [#allocation3], 0
    %11 = vsyncpa [#allocation6], 0
    %12 = vsyncpa [#allocation4], 0
    // Predicated region
    $region2: #{tpu_custom_call.1} parent=1 // pred_check
      _
    $region3: #{tpu_custom_call.1} parent=1 // pred_check_branch
      %14 = sbr.rel (0) target = $region5
    $region4: #{tpu_custom_call.1} parent=1 // pred_region
      %s16 = ssub.s32 4096, 4096
      %17 = vsyncadd [#allocation3], %s16
      %s18 = sshll.u32 [#allocation2], 4
      %s19 = int_to_ptr.vmem [resolvable:$true] %s18
      %24 = dma.hbm_to_vmem [thread:$0]  %s0, 4096, %s19, [#allocation3], 256, 256, 16
    $region5: #{tpu_custom_call.1} parent=1 // pred_fallthru
      _
    // Predicated region
    $region6: #{tpu_custom_call.1} parent=1 // pred_check
      _
    $region7: #{tpu_custom_call.1} parent=1 // pred_check_branch
      %26 = sbr.rel (0) target = $region9
    $region8: #{tpu_custom_call.1} parent=1 // pred_region
      %s28 = ssub.s32 32, 32
      %29 = vsyncadd [#allocation6], %s28
      %s31 = sshll.u32 [#allocation5], 4
      %s32 = int_to_ptr.vmem [resolvable:$true] %s31
      %34 = dma.hbm_to_vmem [thread:$0]  %s1, 32, %s32, [#allocation6]
    $region9: #{tpu_custom_call.1} parent=1 // pred_fallthru
      _
    // Predicated region
    $region10: #{tpu_custom_call.1} parent=1 // pred_check
      _
    $region11: #{tpu_custom_call.1} parent=1 // pred_check_branch
      %36 = sbr.rel (0) target = $region13
    $region12: #{tpu_custom_call.1} parent=1 // pred_region
      _
    $region13: #{tpu_custom_call.1} parent=1 // pred_fallthru
      _
    // Predicated region
    $region14: #{tpu_custom_call.1} parent=1 // pred_check
      _
    $region15: #{tpu_custom_call.1} parent=1 // pred_check_branch
      %38 = sbr.rel (0) target = $region17
    $region16: #{tpu_custom_call.1} parent=1 // pred_region
      %s40 = ssub.s32 8192, 8192
      %41 = vsyncadd [#allocation6], %s40
      %s42 = sshll.u32 [#allocation7], 4
      %s43 = int_to_ptr.vmem [resolvable:$true] %s42
      %48 = dma.hbm_to_vmem [thread:$0]  %s3, 8192, %s43, [#allocation6], 256, 256, 16
    $region17: #{tpu_custom_call.1} parent=1 // pred_fallthru
      _
    // Predicated region
    $region18: #{tpu_custom_call.1} parent=1 // pred_check
      _
    $region19: #{tpu_custom_call.1} parent=1 // pred_check_branch
      %50 = sbr.rel (0) target = $region21
    $region20: #{tpu_custom_call.1} parent=1 // pred_region
      _
    $region21: #{tpu_custom_call.1} parent=1 // pred_fallthru
      _
    // Predicated region
    $region22: #{tpu_custom_call.1} parent=1 // pred_check
      _
    $region23: #{tpu_custom_call.1} parent=1 // pred_check_branch
      %52 = sbr.rel (0) target = $region25
    $region24: #{tpu_custom_call.1} parent=1 // pred_region
      %53 = dma.done [#allocation3], 4096
    $region25: #{tpu_custom_call.1} parent=1 // pred_fallthru
      _
    // Predicated region
    $region26: #{tpu_custom_call.1} parent=1 // pred_check
      _
    $region27: #{tpu_custom_call.1} parent=1 // pred_check_branch
      %55 = sbr.rel (0) target = $region29
    $region28: #{tpu_custom_call.1} parent=1 // pred_region
      %56 = dma.done [#allocation6], 32
    $region29: #{tpu_custom_call.1} parent=1 // pred_fallthru
      _
    // Predicated region
    $region30: #{tpu_custom_call.1} parent=1 // pred_check
      _
    $region31: #{tpu_custom_call.1} parent=1 // pred_check_branch
      %58 = sbr.rel (0) target = $region33
    $region32: #{tpu_custom_call.1} parent=1 // pred_region
      %59 = dma.done [#allocation6], 8192
    $region33: #{tpu_custom_call.1} parent=1 // pred_fallthru
      _
    %v60 = vld [vmem:[#allocation2] sm:$0xff]
    %v61 = vld [vmem:[#allocation2 + $0x8] sm:$0xff]
    %v62 = vld [vmem:[#allocation2 + $0x10] sm:$0xff]
    %v63 = vld [vmem:[#allocation2 + $0x18] sm:$0xff]
    %v64 = vld [vmem:[#allocation2 + $0x20] sm:$0xff]
    %v65 = vld [vmem:[#allocation2 + $0x28] sm:$0xff]
    %v66 = vld [vmem:[#allocation2 + $0x30] sm:$0xff]
    %v67 = vld [vmem:[#allocation2 + $0x38] sm:$0xff]
    %v68 = vld [vmem:[#allocation2 + $0x40] sm:$0xff]
    %v69 = vld [vmem:[#allocation2 + $0x48] sm:$0xff]
    %v70 = vld [vmem:[#allocation2 + $0x50] sm:$0xff]
    %v71 = vld [vmem:[#allocation2 + $0x58] sm:$0xff]
    %v72 = vld [vmem:[#allocation2 + $0x60] sm:$0xff]
    %v73 = vld [vmem:[#allocation2 + $0x68] sm:$0xff]
    %v74 = vld [vmem:[#allocation2 + $0x70] sm:$0xff]
    %v75 = vld [vmem:[#allocation2 + $0x78] sm:$0xff]
    %v76 = vld [vmem:[#allocation2 + $0x80] sm:$0xff]
    %v77 = vld [vmem:[#allocation2 + $0x88] sm:$0xff]
    %v78 = vld [vmem:[#allocation2 + $0x90] sm:$0xff]
    %v79 = vld [vmem:[#allocation2 + $0x98] sm:$0xff]
    %v80 = vld [vmem:[#allocation2 + $0xa0] sm:$0xff]
    %v81 = vld [vmem:[#allocation2 + $0xa8] sm:$0xff]
    %v82 = vld [vmem:[#allocation2 + $0xb0] sm:$0xff]
    %v83 = vld [vmem:[#allocation2 + $0xb8] sm:$0xff]
    %v84 = vld [vmem:[#allocation2 + $0xc0] sm:$0xff]
    %v85 = vld [vmem:[#allocation2 + $0xc8] sm:$0xff]
    %v86 = vld [vmem:[#allocation2 + $0xd0] sm:$0xff]
    %v87 = vld [vmem:[#allocation2 + $0xd8] sm:$0xff]
    %v88 = vld [vmem:[#allocation2 + $0xe0] sm:$0xff]
    %v89 = vld [vmem:[#allocation2 + $0xe8] sm:$0xff]
    %v90 = vld [vmem:[#allocation2 + $0xf0] sm:$0xff]
    %v91 = vld [vmem:[#allocation2 + $0xf8] sm:$0xff]
    %v92 = vadd.f32 %v60, %v61
    %93 = vadd.xlane.f32.xlu0 %v92
    %v94 = vpop.xlane.xlu0 %93
    %v95 = vadd.f32 %v62, %v63
    %96 = vadd.xlane.f32.xlu0 %v95
    %v97 = vpop.xlane.xlu0 %96
    %v98 = vadd.f32 %v64, %v65
    %99 = vadd.xlane.f32.xlu0 %v98
    %v100 = vpop.xlane.xlu0 %99
    %v101 = vadd.f32 %v66, %v67
    %102 = vadd.xlane.f32.xlu0 %v101
    %v103 = vpop.xlane.xlu0 %102
    %v104 = vadd.f32 %v68, %v69
    %105 = vadd.xlane.f32.xlu0 %v104
    %v106 = vpop.xlane.xlu0 %105
    %v107 = vadd.f32 %v70, %v71
    %108 = vadd.xlane.f32.xlu0 %v107
    %v109 = vpop.xlane.xlu0 %108
    %v110 = vadd.f32 %v72, %v73
    %111 = vadd.xlane.f32.xlu0 %v110
    %v112 = vpop.xlane.xlu0 %111
    %v113 = vadd.f32 %v74, %v75
    %114 = vadd.xlane.f32.xlu0 %v113
    %v115 = vpop.xlane.xlu0 %114
    %v116 = vadd.f32 %v76, %v77
    %117 = vadd.xlane.f32.xlu0 %v116
    %v118 = vpop.xlane.xlu0 %117
    %v119 = vadd.f32 %v78, %v79
    %120 = vadd.xlane.f32.xlu0 %v119
    %v121 = vpop.xlane.xlu0 %120
    %v122 = vadd.f32 %v80, %v81
    %123 = vadd.xlane.f32.xlu0 %v122
    %v124 = vpop.xlane.xlu0 %123
    %v125 = vadd.f32 %v82, %v83
    %126 = vadd.xlane.f32.xlu0 %v125
    %v127 = vpop.xlane.xlu0 %126
    %v128 = vadd.f32 %v84, %v85
    %129 = vadd.xlane.f32.xlu0 %v128
    %v130 = vpop.xlane.xlu0 %129
    %v131 = vadd.f32 %v86, %v87
    %132 = vadd.xlane.f32.xlu0 %v131
    %v133 = vpop.xlane.xlu0 %132
    %v134 = vadd.f32 %v88, %v89
    %135 = vadd.xlane.f32.xlu0 %v134
    %v136 = vpop.xlane.xlu0 %135
    %v137 = vadd.f32 %v90, %v91
    %138 = vadd.xlane.f32.xlu0 %v137
    %v139 = vpop.xlane.xlu0 %138
    %v140 = vrcp.pop 256.0
    %v141 = vmul.f32 %v94, %v140
    %v142 = vmul.f32 %v97, %v140
    %v143 = vmul.f32 %v100, %v140
    %v144 = vmul.f32 %v103, %v140
    %v145 = vmul.f32 %v106, %v140
    %v146 = vmul.f32 %v109, %v140
    %v147 = vmul.f32 %v112, %v140
    %v148 = vmul.f32 %v115, %v140
    %v149 = vmul.f32 %v118, %v140
    %v150 = vmul.f32 %v121, %v140
    %v151 = vmul.f32 %v124, %v140
    %v152 = vmul.f32 %v127, %v140
    %v153 = vmul.f32 %v130, %v140
    %v154 = vmul.f32 %v133, %v140
    %v155 = vmul.f32 %v136, %v140
    %v156 = vmul.f32 %v139, %v140
    %v157 = vsub.f32 %v60, %v141
    %v158 = vsub.f32 %v61, %v141
    %v159 = vsub.f32 %v62, %v142
    %v160 = vsub.f32 %v63, %v142
    %v161 = vsub.f32 %v64, %v143
    %v162 = vsub.f32 %v65, %v143
    %v163 = vsub.f32 %v66, %v144
    %v164 = vsub.f32 %v67, %v144
    %v165 = vsub.f32 %v68, %v145
    %v166 = vsub.f32 %v69, %v145
    %v167 = vsub.f32 %v70, %v146
    %v168 = vsub.f32 %v71, %v146
    %v169 = vsub.f32 %v72, %v147
    %v170 = vsub.f32 %v73, %v147
    %v171 = vsub.f32 %v74, %v148
    %v172 = vsub.f32 %v75, %v148
    %v173 = vsub.f32 %v76, %v149
    %v174 = vsub.f32 %v77, %v149
    %v175 = vsub.f32 %v78, %v150
    %v176 = vsub.f32 %v79, %v150
    %v177 = vsub.f32 %v80, %v151
    %v178 = vsub.f32 %v81, %v151
    %v179 = vsub.f32 %v82, %v152
    %v180 = vsub.f32 %v83, %v152
    %v181 = vsub.f32 %v84, %v153
    %v182 = vsub.f32 %v85, %v153
    %v183 = vsub.f32 %v86, %v154
    %v184 = vsub.f32 %v87, %v154
    %v185 = vsub.f32 %v88, %v155
    %v186 = vsub.f32 %v89, %v155
    %v187 = vsub.f32 %v90, %v156
    %v188 = vsub.f32 %v91, %v156
    %v189 = vmul.f32 %v157, %v157
    %v190 = vmul.f32 %v158, %v158
    %v191 = vmul.f32 %v159, %v159
    %v192 = vmul.f32 %v160, %v160
    %v193 = vmul.f32 %v161, %v161
    %v194 = vmul.f32 %v162, %v162
    %v195 = vmul.f32 %v163, %v163
    %v196 = vmul.f32 %v164, %v164
    %v197 = vmul.f32 %v165, %v165
    %v198 = vmul.f32 %v166, %v166
    %v199 = vmul.f32 %v167, %v167
    %v200 = vmul.f32 %v168, %v168
    %v201 = vmul.f32 %v169, %v169
    %v202 = vmul.f32 %v170, %v170
    %v203 = vmul.f32 %v171, %v171
    %v204 = vmul.f32 %v172, %v172
    %v205 = vmul.f32 %v173, %v173
    %v206 = vmul.f32 %v174, %v174
    %v207 = vmul.f32 %v175, %v175
    %v208 = vmul.f32 %v176, %v176
    %v209 = vmul.f32 %v177, %v177
    %v210 = vmul.f32 %v178, %v178
    %v211 = vmul.f32 %v179, %v179
    %v212 = vmul.f32 %v180, %v180
    %v213 = vmul.f32 %v181, %v181
    %v214 = vmul.f32 %v182, %v182
    %v215 = vmul.f32 %v183, %v183
    %v216 = vmul.f32 %v184, %v184
    %v217 = vmul.f32 %v185, %v185
    %v218 = vmul.f32 %v186, %v186
    %v219 = vmul.f32 %v187, %v187
    %v220 = vmul.f32 %v188, %v188
    %v221 = vadd.f32 %v189, %v190
    %222 = vadd.xlane.f32.xlu0 %v221
    %v223 = vpop.xlane.xlu0 %222
    %v224 = vadd.f32 %v191, %v192
    %225 = vadd.xlane.f32.xlu0 %v224
    %v226 = vpop.xlane.xlu0 %225
    %v227 = vadd.f32 %v193, %v194
    %228 = vadd.xlane.f32.xlu0 %v227
    %v229 = vpop.xlane.xlu0 %228
    %v230 = vadd.f32 %v195, %v196
    %231 = vadd.xlane.f32.xlu0 %v230
    %v232 = vpop.xlane.xlu0 %231
    %v233 = vadd.f32 %v197, %v198
    %234 = vadd.xlane.f32.xlu0 %v233
    %v235 = vpop.xlane.xlu0 %234
    %v236 = vadd.f32 %v199, %v200
    %237 = vadd.xlane.f32.xlu0 %v236
    %v238 = vpop.xlane.xlu0 %237
    %v239 = vadd.f32 %v201, %v202
    %240 = vadd.xlane.f32.xlu0 %v239
    %v241 = vpop.xlane.xlu0 %240
    %v242 = vadd.f32 %v203, %v204
    %243 = vadd.xlane.f32.xlu0 %v242
    %v244 = vpop.xlane.xlu0 %243
    %v245 = vadd.f32 %v205, %v206
    %246 = vadd.xlane.f32.xlu0 %v245
    %v247 = vpop.xlane.xlu0 %246
    %v248 = vadd.f32 %v207, %v208
    %249 = vadd.xlane.f32.xlu0 %v248
    %v250 = vpop.xlane.xlu0 %249
    %v251 = vadd.f32 %v209, %v210
    %252 = vadd.xlane.f32.xlu0 %v251
    %v253 = vpop.xlane.xlu0 %252
    %v254 = vadd.f32 %v211, %v212
    %255 = vadd.xlane.f32.xlu0 %v254
    %v256 = vpop.xlane.xlu0 %255
    %v257 = vadd.f32 %v213, %v214
    %258 = vadd.xlane.f32.xlu0 %v257
    %v259 = vpop.xlane.xlu0 %258
    %v260 = vadd.f32 %v215, %v216
    %261 = vadd.xlane.f32.xlu0 %v260
    %v262 = vpop.xlane.xlu0 %261
    %v263 = vadd.f32 %v217, %v218
    %264 = vadd.xlane.f32.xlu0 %v263
    %v265 = vpop.xlane.xlu0 %264
    %v266 = vadd.f32 %v219, %v220
    %267 = vadd.xlane.f32.xlu0 %v266
    %v268 = vpop.xlane.xlu0 %267
    %v269 = vmul.f32 %v223, %v140
    %v270 = vmul.f32 %v226, %v140
    %v271 = vmul.f32 %v229, %v140
    %v272 = vmul.f32 %v232, %v140
    %v273 = vmul.f32 %v235, %v140
    %v274 = vmul.f32 %v238, %v140
    %v275 = vmul.f32 %v241, %v140
    %v276 = vmul.f32 %v244, %v140
    %v277 = vmul.f32 %v247, %v140
    %v278 = vmul.f32 %v250, %v140
    %v279 = vmul.f32 %v253, %v140
    %v280 = vmul.f32 %v256, %v140
    %v281 = vmul.f32 %v259, %v140
    %v282 = vmul.f32 %v262, %v140
    %v283 = vmul.f32 %v265, %v140
    %v284 = vmul.f32 %v268, %v140
    %v285 = vadd.f32 %v269, 1e-05
    %v286 = vadd.f32 %v270, 1e-05
    %v287 = vadd.f32 %v271, 1e-05
    %v288 = vadd.f32 %v272, 1e-05
    %v289 = vadd.f32 %v273, 1e-05
    %v290 = vadd.f32 %v274, 1e-05
    %v291 = vadd.f32 %v275, 1e-05
    %v292 = vadd.f32 %v276, 1e-05
    %v293 = vadd.f32 %v277, 1e-05
    %v294 = vadd.f32 %v278, 1e-05
    %v295 = vadd.f32 %v279, 1e-05
    %v296 = vadd.f32 %v280, 1e-05
    %v297 = vadd.f32 %v281, 1e-05
    %v298 = vadd.f32 %v282, 1e-05
    %v299 = vadd.f32 %v283, 1e-05
    %v300 = vadd.f32 %v284, 1e-05
    %v301 = vrsqrt.pop %v285
    %v302 = vrsqrt.pop %v286
    %v303 = vrsqrt.pop %v287
    %v304 = vrsqrt.pop %v288
    %v305 = vrsqrt.pop %v289
    %v306 = vrsqrt.pop %v290
    %v307 = vrsqrt.pop %v291
    %v308 = vrsqrt.pop %v292
    %v309 = vrsqrt.pop %v293
    %v310 = vrsqrt.pop %v294
    %v311 = vrsqrt.pop %v295
    %v312 = vrsqrt.pop %v296
    %v313 = vrsqrt.pop %v297
    %v314 = vrsqrt.pop %v298
    %v315 = vrsqrt.pop %v299
    %v316 = vrsqrt.pop %v300
    %v317 = vmul.f32 %v157, %v301
    %v318 = vmul.f32 %v158, %v301
    %v319 = vmul.f32 %v159, %v302
    %v320 = vmul.f32 %v160, %v302
    %v321 = vmul.f32 %v161, %v303
    %v322 = vmul.f32 %v162, %v303
    %v323 = vmul.f32 %v163, %v304
    %v324 = vmul.f32 %v164, %v304
    %v325 = vmul.f32 %v165, %v305
    %v326 = vmul.f32 %v166, %v305
    %v327 = vmul.f32 %v167, %v306
    %v328 = vmul.f32 %v168, %v306
    %v329 = vmul.f32 %v169, %v307
    %v330 = vmul.f32 %v170, %v307
    %v331 = vmul.f32 %v171, %v308
    %v332 = vmul.f32 %v172, %v308
    %v333 = vmul.f32 %v173, %v309
    %v334 = vmul.f32 %v174, %v309
    %v335 = vmul.f32 %v175, %v310
    %v336 = vmul.f32 %v176, %v310
    %v337 = vmul.f32 %v177, %v311
    %v338 = vmul.f32 %v178, %v311
    %v339 = vmul.f32 %v179, %v312
    %v340 = vmul.f32 %v180, %v312
    %v341 = vmul.f32 %v181, %v313
    %v342 = vmul.f32 %v182, %v313
    %v343 = vmul.f32 %v183, %v314
    %v344 = vmul.f32 %v184, %v314
    %v345 = vmul.f32 %v185, %v315
    %v346 = vmul.f32 %v186, %v315
    %v347 = vmul.f32 %v187, %v316
    %v348 = vmul.f32 %v188, %v316
    %v349 = vld [vmem:[#allocation5] sm:$0x3]
    %v351 = vlaneseq
    %v352 = vshrl.u32 %v351, 7
    %v353 = vsub.s32 0, %v352
    %v354 = vrot.slane %v349, %v353
    %v355 = vlaneseq
    %v356 = vshrl.u32 %v355, 7
    %v357 = vsub.s32 1, %v356
    %v358 = vrot.slane %v349, %v357
    %v361 = vmul.f32 %v317, %v354
    %v362 = vmul.f32 %v318, %v358
    %v363 = vmul.f32 %v319, %v354
    %v364 = vmul.f32 %v320, %v358
    %v365 = vmul.f32 %v321, %v354
    %v366 = vmul.f32 %v322, %v358
    %v367 = vmul.f32 %v323, %v354
    %v368 = vmul.f32 %v324, %v358
    %v369 = vmul.f32 %v325, %v354
    %v370 = vmul.f32 %v326, %v358
    %v371 = vmul.f32 %v327, %v354
    %v372 = vmul.f32 %v328, %v358
    %v373 = vmul.f32 %v329, %v354
    %v374 = vmul.f32 %v330, %v358
    %v375 = vmul.f32 %v331, %v354
    %v376 = vmul.f32 %v332, %v358
    %v377 = vmul.f32 %v333, %v354
    %v378 = vmul.f32 %v334, %v358
    %v379 = vmul.f32 %v335, %v354
    %v380 = vmul.f32 %v336, %v358
    %v381 = vmul.f32 %v337, %v354
    %v382 = vmul.f32 %v338, %v358
    %v383 = vmul.f32 %v339, %v354
    %v384 = vmul.f32 %v340, %v358
    %v385 = vmul.f32 %v341, %v354
    %v386 = vmul.f32 %v342, %v358
    %v387 = vmul.f32 %v343, %v354
    %v388 = vmul.f32 %v344, %v358
    %v389 = vmul.f32 %v345, %v354
    %v390 = vmul.f32 %v346, %v358
    %v391 = vmul.f32 %v347, %v354
    %v392 = vmul.f32 %v348, %v358
    %v393 = vld [vmem:[%s2] sm:$0x3]
    %v395 = vlaneseq
    %v396 = vshrl.u32 %v395, 7
    %v397 = vsub.s32 0, %v396
    %v398 = vrot.slane %v393, %v397
    %v399 = vlaneseq
    %v400 = vshrl.u32 %v399, 7
    %v401 = vsub.s32 1, %v400
    %v402 = vrot.slane %v393, %v401
    %v405 = vadd.f32 %v361, %v398
    %v406 = vadd.f32 %v362, %v402
    %v407 = vadd.f32 %v363, %v398
    %v408 = vadd.f32 %v364, %v402
    %v409 = vadd.f32 %v365, %v398
    %v410 = vadd.f32 %v366, %v402
    %v411 = vadd.f32 %v367, %v398
    %v412 = vadd.f32 %v368, %v402
    %v413 = vadd.f32 %v369, %v398
    %v414 = vadd.f32 %v370, %v402
    %v415 = vadd.f32 %v371, %v398
    %v416 = vadd.f32 %v372, %v402
    %v417 = vadd.f32 %v373, %v398
    %v418 = vadd.f32 %v374, %v402
    %v419 = vadd.f32 %v375, %v398
    %v420 = vadd.f32 %v376, %v402
    %v421 = vadd.f32 %v377, %v398
    %v422 = vadd.f32 %v378, %v402
    %v423 = vadd.f32 %v379, %v398
    %v424 = vadd.f32 %v380, %v402
    %v425 = vadd.f32 %v381, %v398
    %v426 = vadd.f32 %v382, %v402
    %v427 = vadd.f32 %v383, %v398
    %v428 = vadd.f32 %v384, %v402
    %v429 = vadd.f32 %v385, %v398
    %v430 = vadd.f32 %v386, %v402
    %v431 = vadd.f32 %v387, %v398
    %v432 = vadd.f32 %v388, %v402
    %v433 = vadd.f32 %v389, %v398
    %v434 = vadd.f32 %v390, %v402
    %v435 = vadd.f32 %v391, %v398
    %v436 = vadd.f32 %v392, %v402
    %v437 = vld [vmem:[#allocation7] sm:$0xff]
    %v438 = vld [vmem:[#allocation7 + $0x8] sm:$0xff]
    %v439 = vld [vmem:[#allocation7 + $0x10] sm:$0xff]
    %v440 = vld [vmem:[#allocation7 + $0x18] sm:$0xff]
    %v441 = vld [vmem:[#allocation7 + $0x20] sm:$0xff]
    %v442 = vld [vmem:[#allocation7 + $0x28] sm:$0xff]
    %v443 = vld [vmem:[#allocation7 + $0x30] sm:$0xff]
    %v444 = vld [vmem:[#allocation7 + $0x38] sm:$0xff]
    %v445 = vld [vmem:[#allocation7 + $0x40] sm:$0xff]
    %v446 = vld [vmem:[#allocation7 + $0x48] sm:$0xff]
    %v447 = vld [vmem:[#allocation7 + $0x50] sm:$0xff]
    %v448 = vld [vmem:[#allocation7 + $0x58] sm:$0xff]
    %v449 = vld [vmem:[#allocation7 + $0x60] sm:$0xff]
    %v450 = vld [vmem:[#allocation7 + $0x68] sm:$0xff]
    %v451 = vld [vmem:[#allocation7 + $0x70] sm:$0xff]
    %v452 = vld [vmem:[#allocation7 + $0x78] sm:$0xff]
    %v453 = vld [vmem:[#allocation7 + $0x80] sm:$0xff]
    %v454 = vld [vmem:[#allocation7 + $0x88] sm:$0xff]
    %v455 = vld [vmem:[#allocation7 + $0x90] sm:$0xff]
    %v456 = vld [vmem:[#allocation7 + $0x98] sm:$0xff]
    %v457 = vld [vmem:[#allocation7 + $0xa0] sm:$0xff]
    %v458 = vld [vmem:[#allocation7 + $0xa8] sm:$0xff]
    %v459 = vld [vmem:[#allocation7 + $0xb0] sm:$0xff]
    %v460 = vld [vmem:[#allocation7 + $0xb8] sm:$0xff]
    %v461 = vld [vmem:[#allocation7 + $0xc0] sm:$0xff]
    %v462 = vld [vmem:[#allocation7 + $0xc8] sm:$0xff]
    %v463 = vld [vmem:[#allocation7 + $0xd0] sm:$0xff]
    %v464 = vld [vmem:[#allocation7 + $0xd8] sm:$0xff]
    %v465 = vld [vmem:[#allocation7 + $0xe0] sm:$0xff]
    %v466 = vld [vmem:[#allocation7 + $0xe8] sm:$0xff]
    %v467 = vld [vmem:[#allocation7 + $0xf0] sm:$0xff]
    %v468 = vld [vmem:[#allocation7 + $0xf8] sm:$0xff]
    %v469 = vld [vmem:[#allocation7 + $0x100] sm:$0xff]
    %v470 = vld [vmem:[#allocation7 + $0x108] sm:$0xff]
    %v471 = vld [vmem:[#allocation7 + $0x110] sm:$0xff]
    %v472 = vld [vmem:[#allocation7 + $0x118] sm:$0xff]
    %v473 = vld [vmem:[#allocation7 + $0x120] sm:$0xff]
    %v474 = vld [vmem:[#allocation7 + $0x128] sm:$0xff]
    %v475 = vld [vmem:[#allocation7 + $0x130] sm:$0xff]
    %v476 = vld [vmem:[#allocation7 + $0x138] sm:$0xff]
    %v477 = vld [vmem:[#allocation7 + $0x140] sm:$0xff]
    %v478 = vld [vmem:[#allocation7 + $0x148] sm:$0xff]
    %v479 = vld [vmem:[#allocation7 + $0x150] sm:$0xff]
    %v480 = vld [vmem:[#allocation7 + $0x158] sm:$0xff]
    %v481 = vld [vmem:[#allocation7 + $0x160] sm:$0xff]
    %v482 = vld [vmem:[#allocation7 + $0x168] sm:$0xff]
    %v483 = vld [vmem:[#allocation7 + $0x170] sm:$0xff]
    %v484 = vld [vmem:[#allocation7 + $0x178] sm:$0xff]
    %v485 = vld [vmem:[#allocation7 + $0x180] sm:$0xff]
    %v486 = vld [vmem:[#allocation7 + $0x188] sm:$0xff]
    %v487 = vld [vmem:[#allocation7 + $0x190] sm:$0xff]
    %v488 = vld [vmem:[#allocation7 + $0x198] sm:$0xff]
    %v489 = vld [vmem:[#allocation7 + $0x1a0] sm:$0xff]
    %v490 = vld [vmem:[#allocation7 + $0x1a8] sm:$0xff]
    %v491 = vld [vmem:[#allocation7 + $0x1b0] sm:$0xff]
    %v492 = vld [vmem:[#allocation7 + $0x1b8] sm:$0xff]
    %v493 = vld [vmem:[#allocation7 + $0x1c0] sm:$0xff]
    %v494 = vld [vmem:[#allocation7 + $0x1c8] sm:$0xff]
    %v495 = vld [vmem:[#allocation7 + $0x1d0] sm:$0xff]
    %v496 = vld [vmem:[#allocation7 + $0x1d8] sm:$0xff]
    %v497 = vld [vmem:[#allocation7 + $0x1e0] sm:$0xff]
    %v498 = vld [vmem:[#allocation7 + $0x1e8] sm:$0xff]
    %v499 = vld [vmem:[#allocation7 + $0x1f0] sm:$0xff]
    %v500 = vld [vmem:[#allocation7 + $0x1f8] sm:$0xff]
    %v501 = vld [vmem:[%s4] sm:$0x3]
    %v503 = vlaneseq
    %v504 = vshrl.u32 %v503, 7
    %v505 = vsub.s32 0, %v504
    %v506 = vrot.slane %v501, %v505
    %v507 = vlaneseq
    %v508 = vshrl.u32 %v507, 7
    %v509 = vsub.s32 1, %v508
    %v510 = vrot.slane %v501, %v509
    %513 = vmatprep.subr.mxu0 %v468
    %514 = vmatpush1.msra.mxu0 %v467
    %515 = vmatprep.subr.mxu0 %v466
    %516 = vmatpush1.msra.mxu0 %v465
    %517 = vmatprep.subr.mxu0 %v464
    %518 = vmatpush1.msra.mxu0 %v463
    %519 = vmatprep.subr.mxu0 %v462
    %520 = vmatpush1.msra.mxu0 %v461
    %521 = vmatprep.subr.mxu0 %v460
    %522 = vmatpush1.msra.mxu0 %v459
    %523 = vmatprep.subr.mxu0 %v458
    %524 = vmatpush1.msra.mxu0 %v457
    %525 = vmatprep.subr.mxu0 %v456
    %526 = vmatpush1.msra.mxu0 %v455
    %527 = vmatprep.subr.mxu0 %v454
    %528 = vmatpush1.msra.mxu0 %v453
    %529 = vmatprep.subr.mxu0 %v452
    %530 = vmatpush1.msra.mxu0 %v451
    %531 = vmatprep.subr.mxu0 %v450
    %532 = vmatpush1.msra.mxu0 %v449
    %533 = vmatprep.subr.mxu0 %v448
    %534 = vmatpush1.msra.mxu0 %v447
    %535 = vmatprep.subr.mxu0 %v446
    %536 = vmatpush1.msra.mxu0 %v445
    %537 = vmatprep.subr.mxu0 %v444
    %538 = vmatpush1.msra.mxu0 %v443
    %539 = vmatprep.subr.mxu0 %v442
    %540 = vmatpush1.msra.mxu0 %v441
    %541 = vmatprep.subr.mxu0 %v440
    %542 = vmatpush1.msra.mxu0 %v439
    %543 = vmatprep.subr.mxu0 %v438
    %544 = vmatpush1.msra.mxu0 %v437
    %545 = vmatprep.subr.mxu0 %v500
    %546 = vmatpush2.msra.mxu0 %v499
    %547 = vmatprep.subr.mxu0 %v498
    %548 = vmatpush2.msra.mxu0 %v497
    %549 = vmatprep.subr.mxu0 %v496
    %550 = vmatpush2.msra.mxu0 %v495
    %551 = vmatprep.subr.mxu0 %v494
    %552 = vmatpush2.msra.mxu0 %v493
    %553 = vmatprep.subr.mxu0 %v492
    %554 = vmatpush2.msra.mxu0 %v491
    %555 = vmatprep.subr.mxu0 %v490
    %556 = vmatpush2.msra.mxu0 %v489
    %557 = vmatprep.subr.mxu0 %v488
    %558 = vmatpush2.msra.mxu0 %v487
    %559 = vmatprep.subr.mxu0 %v486
    %560 = vmatpush2.msra.mxu0 %v485
    %561 = vmatprep.subr.mxu0 %v484
    %562 = vmatpush2.msra.mxu0 %v483
    %563 = vmatprep.subr.mxu0 %v482
    %564 = vmatpush2.msra.mxu0 %v481
    %565 = vmatprep.subr.mxu0 %v480
    %566 = vmatpush2.msra.mxu0 %v479
    %567 = vmatprep.subr.mxu0 %v478
    %568 = vmatpush2.msra.mxu0 %v477
    %569 = vmatprep.subr.mxu0 %v476
    %570 = vmatpush2.msra.mxu0 %v475
    %571 = vmatprep.subr.mxu0 %v474
    %572 = vmatpush2.msra.mxu0 %v473
    %573 = vmatprep.subr.mxu0 %v472
    %574 = vmatpush2.msra.mxu0 %v471
    %575 = vmatprep.subr.mxu0 %v470
    %576 = vmatpush2.msra.mxu0 %v469
    %577 = vmatprep.mubr.f32.mxu0 %v406
    %578 = vmatmul.mubr.f32.gmra.mxu0 %v405
    %v579 = vpop.f32.mrf.mxu0
    %v580 = vadd.f32 %v506, %v579
    %v581 = vpop.f32.mrf.mxu0
    %v582 = vadd.f32 %v510, %v581
    %583 = vmatprep.mubr.f32.mxu0 %v408
    %584 = vmatmul.mubr.f32.gmra.mxu0 %v407
    %v585 = vpop.f32.mrf.mxu0
    %v586 = vadd.f32 %v506, %v585
    %v587 = vpop.f32.mrf.mxu0
    %v588 = vadd.f32 %v510, %v587
    %589 = vmatprep.mubr.f32.mxu0 %v410
    %590 = vmatmul.mubr.f32.gmra.mxu0 %v409
    %v591 = vpop.f32.mrf.mxu0
    %v592 = vadd.f32 %v506, %v591
    %v593 = vpop.f32.mrf.mxu0
    %v594 = vadd.f32 %v510, %v593
    %595 = vmatprep.mubr.f32.mxu0 %v412
    %596 = vmatmul.mubr.f32.gmra.mxu0 %v411
    %v597 = vpop.f32.mrf.mxu0
    %v598 = vadd.f32 %v506, %v597
    %v599 = vpop.f32.mrf.mxu0
    %v600 = vadd.f32 %v510, %v599
    %601 = vmatprep.mubr.f32.mxu0 %v414
    %602 = vmatmul.mubr.f32.gmra.mxu0 %v413
    %v603 = vpop.f32.mrf.mxu0
    %v604 = vadd.f32 %v506, %v603
    %v605 = vpop.f32.mrf.mxu0
    %v606 = vadd.f32 %v510, %v605
    %607 = vmatprep.mubr.f32.mxu0 %v416
    %608 = vmatmul.mubr.f32.gmra.mxu0 %v415
    %v609 = vpop.f32.mrf.mxu0
    %v610 = vadd.f32 %v506, %v609
    %v611 = vpop.f32.mrf.mxu0
    %v612 = vadd.f32 %v510, %v611
    %613 = vmatprep.mubr.f32.mxu0 %v418
    %614 = vmatmul.mubr.f32.gmra.mxu0 %v417
    %v615 = vpop.f32.mrf.mxu0
    %v616 = vadd.f32 %v506, %v615
    %v617 = vpop.f32.mrf.mxu0
    %v618 = vadd.f32 %v510, %v617
    %619 = vmatprep.mubr.f32.mxu0 %v420
    %620 = vmatmul.mubr.f32.gmra.mxu0 %v419
    %v621 = vpop.f32.mrf.mxu0
    %v622 = vadd.f32 %v506, %v621
    %v623 = vpop.f32.mrf.mxu0
    %v624 = vadd.f32 %v510, %v623
    %625 = vmatprep.mubr.f32.mxu0 %v422
    %626 = vmatmul.mubr.f32.gmra.mxu0 %v421
    %v627 = vpop.f32.mrf.mxu0
    %v628 = vadd.f32 %v506, %v627
    %v629 = vpop.f32.mrf.mxu0
    %v630 = vadd.f32 %v510, %v629
    %631 = vmatprep.mubr.f32.mxu0 %v424
    %632 = vmatmul.mubr.f32.gmra.mxu0 %v423
    %v633 = vpop.f32.mrf.mxu0
    %v634 = vadd.f32 %v506, %v633
    %v635 = vpop.f32.mrf.mxu0
    %v636 = vadd.f32 %v510, %v635
    %637 = vmatprep.mubr.f32.mxu0 %v426
    %638 = vmatmul.mubr.f32.gmra.mxu0 %v425
    %v639 = vpop.f32.mrf.mxu0
    %v640 = vadd.f32 %v506, %v639
    %v641 = vpop.f32.mrf.mxu0
    %v642 = vadd.f32 %v510, %v641
    %643 = vmatprep.mubr.f32.mxu0 %v428
    %644 = vmatmul.mubr.f32.gmra.mxu0 %v427
    %v645 = vpop.f32.mrf.mxu0
    %v646 = vadd.f32 %v506, %v645
    %v647 = vpop.f32.mrf.mxu0
    %v648 = vadd.f32 %v510, %v647
    %649 = vmatprep.mubr.f32.mxu0 %v430
    %650 = vmatmul.mubr.f32.gmra.mxu0 %v429
    %v651 = vpop.f32.mrf.mxu0
    %v652 = vadd.f32 %v506, %v651
    %v653 = vpop.f32.mrf.mxu0
    %v654 = vadd.f32 %v510, %v653
    %655 = vmatprep.mubr.f32.mxu0 %v432
    %656 = vmatmul.mubr.f32.gmra.mxu0 %v431
    %v657 = vpop.f32.mrf.mxu0
    %v658 = vadd.f32 %v506, %v657
    %v659 = vpop.f32.mrf.mxu0
    %v660 = vadd.f32 %v510, %v659
    %661 = vmatprep.mubr.f32.mxu0 %v434
    %662 = vmatmul.mubr.f32.gmra.mxu0 %v433
    %v663 = vpop.f32.mrf.mxu0
    %v664 = vadd.f32 %v506, %v663
    %v665 = vpop.f32.mrf.mxu0
    %v666 = vadd.f32 %v510, %v665
    %667 = vmatprep.mubr.f32.mxu0 %v436
    %668 = vmatmul.mubr.f32.gmra.mxu0 %v435
    %v669 = vpop.f32.mrf.mxu0
    %v670 = vadd.f32 %v506, %v669
    %v671 = vpop.f32.mrf.mxu0
    %v672 = vadd.f32 %v510, %v671
    %673 = vdwg.mxu0
    %v674 = vadd.f32 %v60, %v580
    %v675 = vadd.f32 %v61, %v582
    %v676 = vadd.f32 %v62, %v586
    %v677 = vadd.f32 %v63, %v588
    %v678 = vadd.f32 %v64, %v592
    %v679 = vadd.f32 %v65, %v594
    %v680 = vadd.f32 %v66, %v598
    %v681 = vadd.f32 %v67, %v600
    %v682 = vadd.f32 %v68, %v604
    %v683 = vadd.f32 %v69, %v606
    %v684 = vadd.f32 %v70, %v610
    %v685 = vadd.f32 %v71, %v612
    %v686 = vadd.f32 %v72, %v616
    %v687 = vadd.f32 %v73, %v618
    %v688 = vadd.f32 %v74, %v622
    %v689 = vadd.f32 %v75, %v624
    %v690 = vadd.f32 %v76, %v628
    %v691 = vadd.f32 %v77, %v630
    %v692 = vadd.f32 %v78, %v634
    %v693 = vadd.f32 %v79, %v636
    %v694 = vadd.f32 %v80, %v640
    %v695 = vadd.f32 %v81, %v642
    %v696 = vadd.f32 %v82, %v646
    %v697 = vadd.f32 %v83, %v648
    %v698 = vadd.f32 %v84, %v652
    %v699 = vadd.f32 %v85, %v654
    %v700 = vadd.f32 %v86, %v658
    %v701 = vadd.f32 %v87, %v660
    %v702 = vadd.f32 %v88, %v664
    %v703 = vadd.f32 %v89, %v666
    %v704 = vadd.f32 %v90, %v670
    %v705 = vadd.f32 %v91, %v672
    %706 = vst [vmem:[#allocation8] sm:$0xff] %v674
    %707 = vst [vmem:[#allocation8 + $0x8] sm:$0xff] %v675
    %708 = vst [vmem:[#allocation8 + $0x10] sm:$0xff] %v676
    %709 = vst [vmem:[#allocation8 + $0x18] sm:$0xff] %v677
    %710 = vst [vmem:[#allocation8 + $0x20] sm:$0xff] %v678
    %711 = vst [vmem:[#allocation8 + $0x28] sm:$0xff] %v679
    %712 = vst [vmem:[#allocation8 + $0x30] sm:$0xff] %v680
    %713 = vst [vmem:[#allocation8 + $0x38] sm:$0xff] %v681
    %714 = vst [vmem:[#allocation8 + $0x40] sm:$0xff] %v682
    %715 = vst [vmem:[#allocation8 + $0x48] sm:$0xff] %v683
    %716 = vst [vmem:[#allocation8 + $0x50] sm:$0xff] %v684
    %717 = vst [vmem:[#allocation8 + $0x58] sm:$0xff] %v685
    %718 = vst [vmem:[#allocation8 + $0x60] sm:$0xff] %v686
    %719 = vst [vmem:[#allocation8 + $0x68] sm:$0xff] %v687
    %720 = vst [vmem:[#allocation8 + $0x70] sm:$0xff] %v688
    %721 = vst [vmem:[#allocation8 + $0x78] sm:$0xff] %v689
    %722 = vst [vmem:[#allocation8 + $0x80] sm:$0xff] %v690
    %723 = vst [vmem:[#allocation8 + $0x88] sm:$0xff] %v691
    %724 = vst [vmem:[#allocation8 + $0x90] sm:$0xff] %v692
    %725 = vst [vmem:[#allocation8 + $0x98] sm:$0xff] %v693
    %726 = vst [vmem:[#allocation8 + $0xa0] sm:$0xff] %v694
    %727 = vst [vmem:[#allocation8 + $0xa8] sm:$0xff] %v695
    %728 = vst [vmem:[#allocation8 + $0xb0] sm:$0xff] %v696
    %729 = vst [vmem:[#allocation8 + $0xb8] sm:$0xff] %v697
    %730 = vst [vmem:[#allocation8 + $0xc0] sm:$0xff] %v698
    %731 = vst [vmem:[#allocation8 + $0xc8] sm:$0xff] %v699
    %732 = vst [vmem:[#allocation8 + $0xd0] sm:$0xff] %v700
    %733 = vst [vmem:[#allocation8 + $0xd8] sm:$0xff] %v701
    %734 = vst [vmem:[#allocation8 + $0xe0] sm:$0xff] %v702
    %735 = vst [vmem:[#allocation8 + $0xe8] sm:$0xff] %v703
    %736 = vst [vmem:[#allocation8 + $0xf0] sm:$0xff] %v704
    %737 = vst [vmem:[#allocation8 + $0xf8] sm:$0xff] %v705
    // Predicated region
    $region34: #{tpu_custom_call.1} parent=1 // pred_check
      _
    $region35: #{tpu_custom_call.1} parent=1 // pred_check_branch
      %739 = sbr.rel (0) target = $region37
    $region36: #{tpu_custom_call.1} parent=1 // pred_region
      %s741 = ssub.s32 4096, 4096
      %742 = vsyncadd [#allocation4], %s741
      %s743 = sshll.u32 [#allocation8], 4
      %s744 = int_to_ptr.vmem [resolvable:$true] %s743
      %749 = dma.vmem_to_hbm [thread:$0]  %s744, 4096, %s5, [#allocation4], 256, 256, 16
    $region37: #{tpu_custom_call.1} parent=1 // pred_fallthru
      _
    // Predicated region
    $region38: #{tpu_custom_call.1} parent=1 // pred_check
      _
    $region39: #{tpu_custom_call.1} parent=1 // pred_check_branch
      %751 = sbr.rel (0) target = $region41
    $region40: #{tpu_custom_call.1} parent=1 // pred_region
      %752 = dma.done [#allocation4], 4096
    $region41: #{tpu_custom_call.1} parent=1 // pred_fallthru
      _
    %753 = vsyncpa [#allocation3], 1
    %754 = vsyncpa [#allocation6], 1
    %755 = vsyncpa [#allocation4], 1

</llo_original>
